<compile_context>
chip_gen: v7x
topology: tpu7x:2x2x1
jax: 0.10.0
libtpu: 0.0.40
codegen_flags: <defaults>
</compile_context>

<pallas_src>
import functools

import jax
import jax.numpy as jnp
import numpy as np
from jax.experimental import pallas as pl
from jax.experimental.pallas import tpu as pltpu


def _round_up(a, m):
    return -(-a // m) * m


def _tpu_config():
    """Generation-specific knobs: VMEM budget, time-tile cap, bf16 gating."""
    kind = ""
    try:
        dev = jax.devices()[0]
        if dev.platform == "tpu":
            kind = dev.device_kind.lower()
    except Exception:
        pass
    if "v7" in kind or "7x" in kind:
        # v7x: 64 MiB VMEM per TensorCore -> cap tiles, leave compiler headroom.
        return {"vmem_limit": 40 * 1024 * 1024, "max_block_t": 1024, "bf16_gate": True}
    if "v6" in kind:
        return {"vmem_limit": 96 * 1024 * 1024, "max_block_t": 4096, "bf16_gate": True}
    if "v5" in kind:
        # v5e: 128 MiB VMEM but no bf16 VPU/EUP -> keep the gate in f32.
        return {"vmem_limit": 96 * 1024 * 1024, "max_block_t": 4096, "bf16_gate": False}
    # Unknown generation: conservative defaults that fit everywhere.
    return {"vmem_limit": None, "max_block_t": 1024, "bf16_gate": True}


def _pick_block_t(T, N, K, Cin_p, G, Cout, cdt_bytes, out_bytes, cfg):
    """Largest lane-dense (multiple-of-128) time tile that fits the VMEM budget."""
    budget = (cfg["vmem_limit"] or (32 * 1024 * 1024)) // 2   # headroom for temporaries
    bt = min(_round_up(cfg["max_block_t"], 128), _round_up(max(T, 1), 128))

    def vmem_est(b):
        taps = 2 * K * Cin_p * b * cdt_bytes        # double-buffered shifted x views
        scratch = K * Cin_p * b * cdt_bytes         # stacked matmul RHS
        outb = 2 * Cout * b * out_bytes             # double-buffered output tile
        inter = 3 * (3 * G) * b * 4                 # acc / y / gated intermediates (f32)
        wgt = 3 * G * K * Cin_p * cdt_bytes + 2 * G * 4
        return taps + scratch + outb + inter + wgt

    while bt > 128 and vmem_est(bt) > budget:
        bt -= 128
    bt = max(bt, 128)
    # Keep at least two grid programs when possible so both v7x TensorCores are fed.
    while N * pl.cdiv(T, bt) < 2 and bt > 128:
        bt = max(128, _round_up(bt // 2, 128))
    return bt


def gcn1d_kernel(*refs, K, G, Cout, Cin_p, gate_dtype):
    """One grid program == one (batch element, time tile).

    refs = (x_tap_0 .. x_tap_{K-1}, w_big, b_eff, out, xw_scratch)
      x_tap_k : (1, Cin_p, block_t) pre-shifted causal tap k (shift done by the DMA)
      w_big   : (3*G, K*Cin_p)  rows [0,G): tanh (BN + FiLM gain folded),
                                 [G,2G): sigmoid, [2G,3G): 1x1 residual (tap K-1 cols)
      b_eff   : (2*G, 1) FiLM bias with eval-mode BN folded in (f32)
      out     : (1, Cout, block_t)
      xw      : (K*Cin_p, block_t) VMEM scratch holding the stacked taps
    """
    tap_refs = refs[:K]
    w_ref = refs[K]
    b_ref = refs[K + 1]
    o_ref = refs[K + 2]
    xw_ref = refs[K + 3]

    # Stack the pre-shifted taps with sublane-aligned full-tile stores
    # (no lane rotations, no masked edge stores).
    for k in range(K):
        xw_ref[k * Cin_p:(k + 1) * Cin_p, :] = tap_refs[k][0]

    # One MXU push per tile: causal conv (+BN, +FiLM gain) and the 1x1 residual.
    acc = jnp.dot(w_ref[...], xw_ref[...], preferred_element_type=jnp.float32)

    y = (acc[:2 * G, :] + b_ref[...]).astype(gate_dtype)        # FiLM bias (BN folded)
    gated = jnp.tanh(y[:G, :]) * jax.nn.sigmoid(y[G:, :])       # GatedAF
    res = acc[2 * G:2 * G + Cout, :].astype(gate_dtype)         # 1x1 residual conv
    o_ref[0] = (gated[:Cout, :] + res).astype(o_ref.dtype)


def gcn1d_block(x, cond, params, *, kernel_size=3, dilation=1,
                compute_dtype=jnp.bfloat16, block_t=None, dma_mode="auto"):
    """x: (N, Cin, T), cond: (1, cond_dim).  Params follow the PyTorch module.

    dma_mode: "element" = K shifted element-offset DMA views of a once-padded x,
              "copies"  = K materialized shifted copies (blocked specs only),
              "auto"    = try "element", silently fall back to "copies".
    """
    N, Cin, T = x.shape
    conv_w = params["conv_w"]        # (K, 2*Cout, Cin); conv_w[k] == torch weight[:, :, k]
    adaptor_w = params["adaptor_w"]  # (4*Cout, cond_dim)
    adaptor_b = params["adaptor_b"]  # (4*Cout, 1)
    bn_mean = params["bn_mean"]      # (2*Cout, 1)
    bn_var = params["bn_var"]        # (2*Cout, 1)
    res_w = params["res_w"]          # (Cout, Cin)

    K, Cout2, _ = conv_w.shape
    Cout = Cout2 // 2
    assert K == kernel_size
    pad = (K - 1) * dilation

    cfg = _tpu_config()
    is_bf16 = jnp.dtype(compute_dtype) == jnp.dtype(jnp.bfloat16)
    gate_dtype = jnp.bfloat16 if (cfg["bf16_gate"] and is_bf16) else jnp.float32
    gate_bf16 = gate_dtype == jnp.bfloat16

    # Sublane / packing alignment (multiples of 8 for f32, 16 for bf16 packing).
    Cin_p = _round_up(Cin, 16 if is_bf16 else 8)
    G = _round_up(Cout, 16 if gate_bf16 else 8)

    out_dtype = x.dtype
    if block_t is None:
        block_t = _pick_block_t(T, N, K, Cin_p, G, Cout,
                                jnp.dtype(compute_dtype).itemsize,
                                jnp.dtype(out_dtype).itemsize, cfg)
    assert block_t % 128 == 0, "block_t must be lane dense (multiple of 128)"
    num_t = pl.cdiv(T, block_t)
    T_pad = num_t * block_t

    # ---- fold FiLM (cond matvec) + eval-mode BatchNorm into the conv weights ----
    f32 = jnp.float32
    gb = (adaptor_w.astype(f32) @ cond.astype(f32).reshape(-1, 1)
          + adaptor_b.astype(f32))                                # (2*Cout2, 1)
    g, b = gb[:Cout2], gb[Cout2:]
    inv_std = jax.lax.rsqrt(bn_var.astype(f32) + 1e-5)            # BatchNorm1d default eps
    g_eff = g * inv_std                                           # (Cout2, 1)
    b_full = b - bn_mean.astype(f32) * g_eff                      # (Cout2, 1)
    w_eff = conv_w.astype(f32) * g_eff[None, :, :]                # (K, Cout2, Cin)

    # Zero-padded, sublane-aligned fused weight.  Column block k multiplies tap k;
    # the residual rows only hit tap K-1 (the "current sample" tap).
    w_tap = jnp.zeros((K, 3 * G, Cin_p), f32)
    w_tap = w_tap.at[:, :Cout, :Cin].set(w_eff[:, :Cout, :])
    w_tap = w_tap.at[:, G:G + Cout, :Cin].set(w_eff[:, Cout:, :])
    w_tap = w_tap.at[K - 1, 2 * G:2 * G + Cout, :Cin].set(res_w.astype(f32))
    w_big = jnp.transpose(w_tap, (1, 0, 2)).reshape(3 * G, K * Cin_p)
    w_big = w_big.astype(compute_dtype)

    b_eff = jnp.zeros((2 * G, 1), f32)
    b_eff = b_eff.at[:Cout].set(b_full[:Cout])
    b_eff = b_eff.at[G:G + Cout].set(b_full[Cout:])

    # ---- single padded copy of x (one XLA pass): channel pad -> Cin_p, causal left pad,
    # right pad to T_pad, cast to the matmul dtype.  No per-tile halo array. ----
    x_pad = jnp.pad(x, ((0, 0), (0, Cin_p - Cin), (pad, T_pad - T))).astype(compute_dtype)

    kernel = functools.partial(gcn1d_kernel, K=K, G=G, Cout=Cout, Cin_p=Cin_p,
                               gate_dtype=gate_dtype)

    out_shape = jax.ShapeDtypeStruct((N, Cout, T), out_dtype)
    out_spec = pl.BlockSpec((1, Cout, block_t), lambda n, t: (n, 0, t))
    w_spec = pl.BlockSpec((3 * G, K * Cin_p), lambda n, t: (0, 0))   # resident across grid
    b_spec = pl.BlockSpec((2 * G, 1), lambda n, t: (0, 0))           # resident across grid
    scratch = [pltpu.VMEM((K * Cin_p, block_t), compute_dtype)]
    cparams = pltpu.CompilerParams(
        dimension_semantics=("parallel", "parallel"),
        vmem_limit_bytes=cfg["vmem_limit"])

    def call(tap_specs, tap_args):
        return pl.pallas_call(
            kernel,
            out_shape=out_shape,
            grid_spec=pltpu.PrefetchScalarGridSpec(
                num_scalar_prefetch=0,
                grid=(N, num_t),
                in_specs=list(tap_specs) + [w_spec, b_spec],
                out_specs=out_spec,
                scratch_shapes=scratch),
            compiler_params=cparams,
        )(*tap_args, w_big, b_eff)

    def make_tap_map(off, bt):
        return lambda n, t: (n, 0, t * bt + off)

    if dma_mode in ("auto", "element"):
        # K shifted element-offset DMA views of the SAME padded array: the DMA engine
        # performs the causal shift, and pad > block_t needs no special casing.
        tap_specs = [
            pl.BlockSpec((1, Cin_p, pl.Element(block_t)),
                         make_tap_map(k * dilation, block_t))
            for k in range(K)]
        try:
            return call(tap_specs, (x_pad,) * K)
        except Exception:
            if dma_mode == "element":
                raise
            # Element-offset indexing unavailable -> fall through to blocked copies.

    # Fallback: materialize the K shifted views once (extra wrapper HBM traffic, but
    # only standard blocked indexing is required).  Same kernel, same results.
    taps = tuple(x_pad[:, :, k * dilation:k * dilation + T_pad] for k in range(K))
    tap_specs = [pl.BlockSpec((1, Cin_p, block_t), lambda n, t: (n, 0, t))
                 for _ in range(K)]
    return call(tap_specs, taps)


def gcn1d_ref(x, cond, params, *, kernel_size=3, dilation=1):
    """Pure-JAX unfused reference with PyTorch semantics (for correctness checks)."""
    pad = (kernel_size - 1) * dilation
    K, Cout2, _ = params["conv_w"].shape
    Cout = Cout2 // 2
    N, Cin, T = x.shape
    xpad = jnp.pad(x, ((0, 0), (0, 0), (pad, 0)))
    acc = jnp.zeros((N, Cout2, T), jnp.float32)
    for k in range(K):
        off = k * dilation
        acc = acc + jnp.einsum("oc,nct->not", params["conv_w"][k],
                               xpad[:, :, off:off + T])
    xh = (acc - params["bn_mean"][None]) * jax.lax.rsqrt(params["bn_var"][None] + 1e-5)
    gb = params["adaptor_w"] @ cond.T + params["adaptor_b"]        # (2*Cout2, 1)
    y = xh * gb[None, :Cout2, :] + gb[None, Cout2:, :]
    gated = jnp.tanh(y[:, :Cout]) * jax.nn.sigmoid(y[:, Cout:])
    res = jnp.einsum("oc,nct->not", params["res_w"], x)
    return gated + res


def _make_params(key, K, Cin, Cout, cond_dim):
    Cout2 = 2 * Cout
    k_w, k_aw, k_ab, k_r = jax.random.split(key, 4)
    return {
        # nn.Conv1d(in_ch, 2*out_ch, K) weight stored tap-major: conv_w[k] == w[:, :, k]
        "conv_w": jax.random.normal(k_w, (K, Cout2, Cin), jnp.float32) * 0.2,
        # nn.Linear(cond_dim, 2 * 2*out_ch)
        "adaptor_w": jax.random.normal(k_aw, (2 * Cout2, cond_dim), jnp.float32) * 0.3,
        "adaptor_b": jax.random.normal(k_ab, (2 * Cout2, 1), jnp.float32) * 0.1,
        # BatchNorm1d(2*out_ch, affine=False) running stats (eval mode)
        "bn_mean": jnp.zeros((Cout2, 1), jnp.float32),
        "bn_var": jnp.ones((Cout2, 1), jnp.float32),
        # nn.Conv1d(in_ch, out_ch, 1, bias=False) weight squeezed to (out_ch, in_ch)
        "res_w": jax.random.normal(k_r, (Cout, Cin), jnp.float32) * 0.3,
    }


if __name__ == "__main__":
    # Shapes consistent with the module: GCN1DBlock(in_ch=4, out_ch=4, kernel_size=3,
    # dilation=1, stride=1, cond_dim=3, use_bias_in_conv=False), batch=2, T=16.
    key = jax.random.PRNGKey(0)
    k_x, k_c, k_p, k_x2, k_c2, k_p2, k_m, k_v = jax.random.split(key, 8)

    N, Cin, Cout, T, K, dil, cond_dim = 2, 4, 4, 16, 3, 1, 3
    x = jax.random.normal(k_x, (N, Cin, T), jnp.float32)
    cond = jax.random.normal(k_c, (1, cond_dim), jnp.float32)
    params = _make_params(k_p, K, Cin, Cout, cond_dim)
    ref = gcn1d_ref(x, cond, params, kernel_size=K, dilation=dil)

    # f32 operand path.
    out_f32 = jax.block_until_ready(
        gcn1d_block(x, cond, params, kernel_size=K, dilation=dil,
                    compute_dtype=jnp.float32))
    np.testing.assert_allclose(np.asarray(out_f32), np.asarray(ref),
                               rtol=2e-2, atol=2e-2)

    # Default path: bf16 matmul operands, f32 accumulation, bf16 gate on v6e/v7x.
    out_bf16 = jax.block_until_ready(
        gcn1d_block(x, cond, params, kernel_size=K, dilation=dil))
    np.testing.assert_allclose(np.asarray(out_bf16), np.asarray(ref),
                               rtol=5e-2, atol=5e-2)

    # Multi-tile + dilation + T not a multiple of 128: exercises the cross-tile causal
    # windows, the partial trailing output block, and nontrivial BN running stats.
    N2, Cin2, Cout2b, T2, K2, dil2 = 1, 8, 8, 300, 3, 4
    x2 = jax.random.normal(k_x2, (N2, Cin2, T2), jnp.float32)
    cond2 = jax.random.normal(k_c2, (1, cond_dim), jnp.float32)
    params2 = _make_params(k_p2, K2, Cin2, Cout2b, cond_dim)
    params2["bn_mean"] = 0.2 * jax.random.normal(k_m, (2 * Cout2b, 1), jnp.float32)
    params2["bn_var"] = 1.0 + 0.3 * jax.random.uniform(k_v, (2 * Cout2b, 1), jnp.float32)
    ref2 = gcn1d_ref(x2, cond2, params2, kernel_size=K2, dilation=dil2)
    out2 = jax.block_until_ready(
        gcn1d_block(x2, cond2, params2, kernel_size=K2, dilation=dil2,
                    compute_dtype=jnp.float32, block_t=128))
    np.testing.assert_allclose(np.asarray(out2), np.asarray(ref2),
                               rtol=2e-2, atol=2e-2)

    print("KERNEL_OK")
</pallas_src>

<mosaic_0001>
module attributes {stable_mosaic.version = 11 : i64} {
  func.func @gcn1d_kernel(%arg0: i32, %arg1: i32, %arg2: memref<1x8x128xf32, #tpu.memory_space<vmem>>, %arg3: memref<1x8x128xf32, #tpu.memory_space<vmem>>, %arg4: memref<1x8x128xf32, #tpu.memory_space<vmem>>, %arg5: memref<24x24xf32, #tpu.memory_space<vmem>>, %arg6: memref<16x1xf32, #tpu.memory_space<vmem>>, %arg7: memref<1x4x128xf32, #tpu.memory_space<vmem>>, %arg8: memref<24x128xf32, #tpu.memory_space<vmem>>) attributes {dimension_semantics = [#tpu.dimension_semantics<parallel>, #tpu.dimension_semantics<parallel>], iteration_bounds = array<i64: 2, 1>, scalar_prefetch = 0 : i64, scratch_operands = 1 : i64, tpu.core_type = #tpu.core_type<tc>, window_params = [{transform_indices = @transform_0, window_bounds = array<i64: 1, 8, 128>}, {transform_indices = @transform_1, window_bounds = array<i64: 1, 8, 128>}, {transform_indices = @transform_2, window_bounds = array<i64: 1, 8, 128>}, {pipeline_mode = #tpu.pipeline_mode<synchronous>, transform_indices = @transform_3, window_bounds = array<i64: 24, 24>}, {pipeline_mode = #tpu.pipeline_mode<synchronous>, transform_indices = @transform_4, window_bounds = array<i64: 16, 1>}, {transform_indices = @transform_5, window_bounds = array<i64: 1, 4, 128>}]} {
    %c0 = arith.constant 0 : index
    %c0_0 = arith.constant 0 : index
    %c0_1 = arith.constant 0 : index
    %0 = vector.load %arg2[%c0, %c0_0, %c0_1] : memref<1x8x128xf32, #tpu.memory_space<vmem>>, vector<1x8x128xf32>
    %1 = vector.shape_cast %0 : vector<1x8x128xf32> to vector<8x128xf32>
    %c0_2 = arith.constant 0 : index
    %c0_3 = arith.constant 0 : index
    %2 = vector.load %arg8[%c0_2, %c0_3] : memref<24x128xf32, #tpu.memory_space<vmem>>, vector<8x128xf32>
    tpu.vector_store %arg8[%c0_2, %c0_3], %1 {strides = array<i32>} : memref<24x128xf32, #tpu.memory_space<vmem>>, vector<8x128xf32>,
    %c0_4 = arith.constant 0 : index
    %c0_5 = arith.constant 0 : index
    %c0_6 = arith.constant 0 : index
    %3 = vector.load %arg3[%c0_4, %c0_5, %c0_6] : memref<1x8x128xf32, #tpu.memory_space<vmem>>, vector<1x8x128xf32>
    %4 = vector.shape_cast %3 : vector<1x8x128xf32> to vector<8x128xf32>
    %c8 = arith.constant 8 : index
    %c0_7 = arith.constant 0 : index
    %5 = vector.load %arg8[%c8, %c0_7] : memref<24x128xf32, #tpu.memory_space<vmem>>, vector<8x128xf32>
    tpu.vector_store %arg8[%c8, %c0_7], %4 {strides = array<i32>} : memref<24x128xf32, #tpu.memory_space<vmem>>, vector<8x128xf32>,
    %c0_8 = arith.constant 0 : index
    %c0_9 = arith.constant 0 : index
    %c0_10 = arith.constant 0 : index
    %6 = vector.load %arg4[%c0_8, %c0_9, %c0_10] : memref<1x8x128xf32, #tpu.memory_space<vmem>>, vector<1x8x128xf32>
    %7 = vector.shape_cast %6 : vector<1x8x128xf32> to vector<8x128xf32>
    %c16 = arith.constant 16 : index
    %c0_11 = arith.constant 0 : index
    %8 = vector.load %arg8[%c16, %c0_11] : memref<24x128xf32, #tpu.memory_space<vmem>>, vector<8x128xf32>
    tpu.vector_store %arg8[%c16, %c0_11], %7 {strides = array<i32>} : memref<24x128xf32, #tpu.memory_space<vmem>>, vector<8x128xf32>,
    %c0_12 = arith.constant 0 : index
    %c0_13 = arith.constant 0 : index
    %9 = vector.load %arg5[%c0_12, %c0_13] : memref<24x24xf32, #tpu.memory_space<vmem>>, vector<24x24xf32>
    %c0_14 = arith.constant 0 : index
    %c0_15 = arith.constant 0 : index
    %10 = vector.load %arg8[%c0_14, %c0_15] : memref<24x128xf32, #tpu.memory_space<vmem>>, vector<24x128xf32>
    %cst = arith.constant dense<0.000000e+00> : vector<24x128xf32>
    %11 = tpu.matmul %9, %10, %cst {dimension_numbers = #tpu.dot_dimension_numbers<[1], [0], [0], [1], [0, 0, 1, 1], [], []>} : vector<24x24xf32>, vector<24x128xf32>, vector<24x128xf32> -> vector<24x128xf32>
    %12 = vector.extract_strided_slice %11 {offsets = [0, 0], sizes = [16, 128], strides = [1, 1]} : vector<24x128xf32> to vector<16x128xf32>
    %c0_16 = arith.constant 0 : index
    %c0_17 = arith.constant 0 : index
    %13 = vector.load %arg6[%c0_16, %c0_17] : memref<16x1xf32, #tpu.memory_space<vmem>>, vector<16x1xf32>
    %14 = vector.broadcast %13 : vector<16x1xf32> to vector<16x128xf32>
    %15 = arith.addf %12, %14 : vector<16x128xf32>
    %16 = vector.extract_strided_slice %15 {offsets = [0, 0], sizes = [8, 128], strides = [1, 1]} : vector<16x128xf32> to vector<8x128xf32>
    %17 = math.tanh %16 : vector<8x128xf32>
    %18 = vector.extract_strided_slice %15 {offsets = [8, 0], sizes = [8, 128], strides = [1, 1]} : vector<16x128xf32> to vector<8x128xf32>
    %19 = arith.negf %18 : vector<8x128xf32>
    %20 = math.exp %19 : vector<8x128xf32>
    %cst_18 = arith.constant 1.000000e+00 : f32
    %21 = vector.broadcast %cst_18 : f32 to vector<8x128xf32>
    %22 = arith.addf %21, %20 : vector<8x128xf32>
    %23 = arith.divf %21, %22 : vector<8x128xf32>
    %24 = arith.mulf %17, %23 : vector<8x128xf32>
    %25 = vector.extract_strided_slice %11 {offsets = [16, 0], sizes = [4, 128], strides = [1, 1]} : vector<24x128xf32> to vector<4x128xf32>
    %26 = vector.extract_strided_slice %24 {offsets = [0, 0], sizes = [4, 128], strides = [1, 1]} : vector<8x128xf32> to vector<4x128xf32>
    %27 = arith.addf %26, %25 : vector<4x128xf32>
    %c0_19 = arith.constant 0 : index
    %c0_20 = arith.constant 0 : index
    %c0_21 = arith.constant 0 : index
    %28 = vector.load %arg7[%c0_19, %c0_20, %c0_21] : memref<1x4x128xf32, #tpu.memory_space<vmem>>, vector<1x4x128xf32>
    %29 = vector.shape_cast %28 : vector<1x4x128xf32> to vector<4x128xf32>
    %30 = vector.shape_cast %27 : vector<4x128xf32> to vector<1x4x128xf32>
    tpu.vector_store %arg7[%c0_19, %c0_20, %c0_21], %30 {strides = array<i32>} : memref<1x4x128xf32, #tpu.memory_space<vmem>>, vector<1x4x128xf32>,
    return
  }
  func.func @transform_0(%arg0: i32, %arg1: i32) -> (i32, i32, i32) {
    %c0_i32 = arith.constant 0 : i32
    %c0_i32_0 = arith.constant 0 : i32
    return %arg0, %c0_i32, %arg1 : i32, i32, i32
  }
  func.func @transform_1(%arg0: i32, %arg1: i32) -> (i32, i32, i32) {
    %c0_i32 = arith.constant 0 : i32
    %c0_i32_0 = arith.constant 0 : i32
    return %arg0, %c0_i32, %arg1 : i32, i32, i32
  }
  func.func @transform_2(%arg0: i32, %arg1: i32) -> (i32, i32, i32) {
    %c0_i32 = arith.constant 0 : i32
    %c0_i32_0 = arith.constant 0 : i32
    return %arg0, %c0_i32, %arg1 : i32, i32, i32
  }
  func.func @transform_3(%arg0: i32, %arg1: i32) -> (i32, i32) {
    %c0_i32 = arith.constant 0 : i32
    %c0_i32_0 = arith.constant 0 : i32
    %c0_i32_1 = arith.constant 0 : i32
    return %c0_i32, %c0_i32_0 : i32, i32
  }
  func.func @transform_4(%arg0: i32, %arg1: i32) -> (i32, i32) {
    %c0_i32 = arith.constant 0 : i32
    %c0_i32_0 = arith.constant 0 : i32
    %c0_i32_1 = arith.constant 0 : i32
    return %c0_i32, %c0_i32_0 : i32, i32
  }
  func.func @transform_5(%arg0: i32, %arg1: i32) -> (i32, i32, i32) {
    %c0_i32 = arith.constant 0 : i32
    %c0_i32_0 = arith.constant 0 : i32
    return %arg0, %c0_i32, %arg1 : i32, i32, i32
  }
}

</mosaic_0001>

<llo_original>
// kernel: tpu_custom_call.1
$region0: #{tpu_custom_call.1}
  #allocation0 [shape = 'u32[]', space=smem, size = 0x4, offset = 0x4, fixed_abs, tag = 'smem constant byte address 0x4 - core index']
  #allocation1 [shape = 'u32[144,128]{1,0:T(1,128)}', space=vmem, size = 0x12000, scoped, tag = 'internal scratch']
  #allocation2 [shape = 'f32[24,128]{1,0:T(8,128)}', space=vmem, size = 0x3000, scoped, tag = 'scratch operand']
  %s0 = inlined_call_operand.hbm [shape: f32[2,8,128], index: 0, kind: input, shape index: {}]
  %s1 = inlined_call_operand.hbm [shape: f32[2,8,128], index: 1, kind: input, shape index: {}]
  %s2 = inlined_call_operand.hbm [shape: f32[2,8,128], index: 2, kind: input, shape index: {}]
  %s3 = inlined_call_operand.vmem [shape: f32[24,24], index: 3, kind: input, shape index: {}]
  %s4 = inlined_call_operand.vmem [shape: f32[16,1], index: 4, kind: input, shape index: {}]
  %s5 = inlined_call_operand.hbm [shape: f32[2,4,16], index: 5, kind: output, shape index: {}]
  %s6 = sld [smem:[#allocation0]]
  $region65: #{tpu_custom_call.1} parent=0
    _
  %s8 = ssub.s32 1, %s6
  %s9 = scalar_select 0, %s8, %s6
  $region1: #{tpu_custom_call.1} parent=0
    #allocation3 [shape = 'u8[8192]{0}', space=vmem, size = 0x2000, scoped, tag = 'input window, operand 0']
    #allocation4 [shape = 's32[2]{0}', space=sflag, size = 0x8, scoped, tag = 'scoped memory for tpu_custom_call.1']
    #allocation5 [shape = 's32[2]{0}', space=sflag, size = 0x8, scoped, tag = 'scoped memory for tpu_custom_call.1']
    #allocation6 [shape = 'u8[8192]{0}', space=vmem, size = 0x2000, scoped, tag = 'input window, operand 1']
    #allocation7 [shape = 's32[2]{0}', space=sflag, size = 0x8, scoped, tag = 'scoped memory for tpu_custom_call.1']
    #allocation8 [shape = 'u8[8192]{0}', space=vmem, size = 0x2000, scoped, tag = 'input window, operand 2']
    #allocation9 [shape = 'u8[4096]{0}', space=vmem, size = 0x1000, scoped, tag = 'output window, operand 0']
    %10 = vsyncpa [#allocation4], 0
    %s11 = scalar_lea.sflag [#allocation4], 1
    %12 = vsyncpa %s11, 0
    %13 = vsyncpa [#allocation7], 0
    %s14 = scalar_lea.sflag [#allocation7], 1
    %15 = vsyncpa %s14, 0
    %16 = vsyncpa [#allocation5], 0
    %s17 = scalar_lea.sflag [#allocation5], 1
    %18 = vsyncpa %s17, 0
    loop: start=0, step=1, limit=4
    $region2: #{tpu_custom_call.1} parent=1 // loop_pre_header
      _
    $region3: #{tpu_custom_call.1} parent=1 // loop_header
      %s20 = sphi 0, %s24
      %p21 = scmp.ge.s32.totalorder %s20, 4
      %s27 = sphi 0, %s39
      %s28 = sphi 0, %s35
      %s29 = sphi 0, %s27
      %s30 = sphi 0, %s28
      %s31 = sphi 0, %s29
      %s32 = sphi 0, %s30
      %s44 = sphi 0, %s46
      %s47 = sphi 0, %s44
      %s48 = sphi 0, %s47
      %s64 = sphi 0, %s48
      %s72 = sphi 0, %s74
      %s75 = sphi 0, %s72
      %s76 = sphi 0, %s75
      %s92 = sphi 0, %s76
      %s100 = sphi 0, %s102
      %s103 = sphi 0, %s100
      %s104 = sphi 0, %s103
      %s120 = sphi 0, %s104
      %s124 = sphi 0, %s124
      %s126 = sphi 0, %s124
      %s127 = sphi 0, %s126
      %s141 = sphi 0, %s127
      %s145 = sphi 0, %s145
      %s147 = sphi 0, %s145
      %s148 = sphi 0, %s147
      %s162 = sphi 0, %s148
      %s170 = sphi 0, %s172
      %s173 = sphi 0, %s170
      %s174 = sphi 0, %s173
      %s190 = sphi 0, %s174
    $region4: #{tpu_custom_call.1} parent=1 // loop_header_branch
      %23 = sbr.rel (%p21) target = $region8
    $region5: #{tpu_custom_call.1} parent=1 // loop_body
      %s25 = ssub.s32 %s20, 1
      %s26 = ssub.s32 %s20, 2
      %s33 = sadd.s32 1, %s28
      %p34 = scmp.ge.s32.totalorder %s33, 1
      %s35 = scalar_select %p34, 0, %s33
      %s36 = sadd.s32 1, %s27
      %s37 = scalar_select %p34, %s36, %s27
      %p38 = scmp.ge.s32.totalorder %s37, 2
      %s39 = scalar_select %p38, 0, %s37
      %s40 = ssub.s32 %s27, %s39
      %s41 = ssub.s32 %s28, %s35
      %s42 = sor.u32 %s40, %s41
      %p43 = scmp.eq.s32.totalorder %s42, 0
      %s45 = sadd.s32 %s44, 1
      %s46 = scalar_select %p43, %s44, %s45
      %p49 = pneg %p43
      %p50 = scmp.eq.s32.totalorder %s20, 1
      %p51 = por %p49, %p50
      %p52 = scmp.ne.s32.totalorder %s44, %s47
      %p53 = scmp.eq.s32.totalorder %s20, 0
      %p54 = por %p52, %p53
      %p55 = scmp.ne.s32.totalorder %s44, %s47
      %p56 = scmp.eq.s32.totalorder %s25, 1
      %p57 = por %p55, %p56
      %p58 = scmp.ne.s32.totalorder %s47, %s48
      %p59 = scmp.eq.s32.totalorder %s25, 0
      %p60 = por %p58, %p59
      %p61 = scmp.ne.s32.totalorder %s47, %s48
      %p62 = scmp.eq.s32.totalorder %s26, 1
      %p63 = por %p61, %p62
      %p65 = scmp.ne.s32.totalorder %s48, %s64
      %p66 = scmp.eq.s32.totalorder %s26, 0
      %p67 = por %p65, %p66
      %s68 = ssub.s32 %s27, %s39
      %s69 = ssub.s32 %s28, %s35
      %s70 = sor.u32 %s68, %s69
      %p71 = scmp.eq.s32.totalorder %s70, 0
      %s73 = sadd.s32 %s72, 1
      %s74 = scalar_select %p71, %s72, %s73
      %p77 = pneg %p71
      %p78 = scmp.eq.s32.totalorder %s20, 1
      %p79 = por %p77, %p78
      %p80 = scmp.ne.s32.totalorder %s72, %s75
      %p81 = scmp.eq.s32.totalorder %s20, 0
      %p82 = por %p80, %p81
      %p83 = scmp.ne.s32.totalorder %s72, %s75
      %p84 = scmp.eq.s32.totalorder %s25, 1
      %p85 = por %p83, %p84
      %p86 = scmp.ne.s32.totalorder %s75, %s76
      %p87 = scmp.eq.s32.totalorder %s25, 0
      %p88 = por %p86, %p87
      %p89 = scmp.ne.s32.totalorder %s75, %s76
      %p90 = scmp.eq.s32.totalorder %s26, 1
      %p91 = por %p89, %p90
      %p93 = scmp.ne.s32.totalorder %s76, %s92
      %p94 = scmp.eq.s32.totalorder %s26, 0
      %p95 = por %p93, %p94
      %s96 = ssub.s32 %s27, %s39
      %s97 = ssub.s32 %s28, %s35
      %s98 = sor.u32 %s96, %s97
      %p99 = scmp.eq.s32.totalorder %s98, 0
      %s101 = sadd.s32 %s100, 1
      %s102 = scalar_select %p99, %s100, %s101
      %p105 = pneg %p99
      %p106 = scmp.eq.s32.totalorder %s20, 1
      %p107 = por %p105, %p106
      %p108 = scmp.ne.s32.totalorder %s100, %s103
      %p109 = scmp.eq.s32.totalorder %s20, 0
      %p110 = por %p108, %p109
      %p111 = scmp.ne.s32.totalorder %s100, %s103
      %p112 = scmp.eq.s32.totalorder %s25, 1
      %p113 = por %p111, %p112
      %p114 = scmp.ne.s32.totalorder %s103, %s104
      %p115 = scmp.eq.s32.totalorder %s25, 0
      %p116 = por %p114, %p115
      %p117 = scmp.ne.s32.totalorder %s103, %s104
      %p118 = scmp.eq.s32.totalorder %s26, 1
      %p119 = por %p117, %p118
      %p121 = scmp.ne.s32.totalorder %s104, %s120
      %p122 = scmp.eq.s32.totalorder %s26, 0
      %p123 = por %p121, %p122
      %s125 = sadd.s32 %s124, 1
      %p128 = scmp.eq.s32.totalorder %s20, 1
      %p129 = scmp.ne.s32.totalorder %s124, %s126
      %p130 = scmp.eq.s32.totalorder %s20, 0
      %p131 = por %p129, %p130
      %p132 = scmp.ne.s32.totalorder %s124, %s126
      %p133 = scmp.eq.s32.totalorder %s25, 1
      %p134 = por %p132, %p133
      %p135 = scmp.ne.s32.totalorder %s126, %s127
      %p136 = scmp.eq.s32.totalorder %s25, 0
      %p137 = por %p135, %p136
      %p138 = scmp.ne.s32.totalorder %s126, %s127
      %p139 = scmp.eq.s32.totalorder %s26, 1
      %p140 = por %p138, %p139
      %p142 = scmp.ne.s32.totalorder %s127, %s141
      %p143 = scmp.eq.s32.totalorder %s26, 0
      %p144 = por %p142, %p143
      %s146 = sadd.s32 %s145, 1
      %p149 = scmp.eq.s32.totalorder %s20, 1
      %p150 = scmp.ne.s32.totalorder %s145, %s147
      %p151 = scmp.eq.s32.totalorder %s20, 0
      %p152 = por %p150, %p151
      %p153 = scmp.ne.s32.totalorder %s145, %s147
      %p154 = scmp.eq.s32.totalorder %s25, 1
      %p155 = por %p153, %p154
      %p156 = scmp.ne.s32.totalorder %s147, %s148
      %p157 = scmp.eq.s32.totalorder %s25, 0
      %p158 = por %p156, %p157
      %p159 = scmp.ne.s32.totalorder %s147, %s148
      %p160 = scmp.eq.s32.totalorder %s26, 1
      %p161 = por %p159, %p160
      %p163 = scmp.ne.s32.totalorder %s148, %s162
      %p164 = scmp.eq.s32.totalorder %s26, 0
      %p165 = por %p163, %p164
      %s166 = ssub.s32 %s27, %s39
      %s167 = ssub.s32 %s28, %s35
      %s168 = sor.u32 %s166, %s167
      %p169 = scmp.eq.s32.totalorder %s168, 0
      %s171 = sadd.s32 %s170, 1
      %s172 = scalar_select %p169, %s170, %s171
      %p175 = pneg %p169
      %p176 = scmp.eq.s32.totalorder %s20, 1
      %p177 = por %p175, %p176
      %p178 = scmp.ne.s32.totalorder %s170, %s173
      %p179 = scmp.eq.s32.totalorder %s20, 0
      %p180 = por %p178, %p179
      %p181 = scmp.ne.s32.totalorder %s170, %s173
      %p182 = scmp.eq.s32.totalorder %s25, 1
      %p183 = por %p181, %p182
      %p184 = scmp.ne.s32.totalorder %s173, %s174
      %p185 = scmp.eq.s32.totalorder %s25, 0
      %p186 = por %p184, %p185
      %p187 = scmp.ne.s32.totalorder %s173, %s174
      %p188 = scmp.eq.s32.totalorder %s26, 1
      %p189 = por %p187, %p188
      %p191 = scmp.ne.s32.totalorder %s174, %s190
      %p192 = scmp.eq.s32.totalorder %s26, 0
      %p193 = por %p191, %p192
      %p194 = scmp.le.s32.totalorder 1, %s20
      %p195 = scmp.lt.s32.totalorder %s20, 3
      %p196 = pnand %p194, %p195
      %p197 = pneg %p196
      // Predicated region
      $region9: #{tpu_custom_call.1} parent=5 // pred_check
        _
      $region10: #{tpu_custom_call.1} parent=5 // pred_check_branch
        %199 = sbr.rel (%p196) target = $region12
      $region11: #{tpu_custom_call.1} parent=5 // pred_region
        %s200 = ssub.s32 %s20, 1
        // Predicated region
        $region13: #{tpu_custom_call.1} parent=11 // pred_check
          %p201 = pneg %p137
        $region14: #{tpu_custom_call.1} parent=11 // pred_check_branch
          %203 = sbr.rel (%p201) target = $region16
        $region15: #{tpu_custom_call.1} parent=11 // pred_region
          _
        $region16: #{tpu_custom_call.1} parent=11 // pred_fallthru
          _
        // Predicated region
        $region17: #{tpu_custom_call.1} parent=11 // pred_check
          %p204 = pneg %p158
        $region18: #{tpu_custom_call.1} parent=11 // pred_check_branch
          %206 = sbr.rel (%p204) target = $region20
        $region19: #{tpu_custom_call.1} parent=11 // pred_region
          _
        $region20: #{tpu_custom_call.1} parent=11 // pred_fallthru
          _
      $region12: #{tpu_custom_call.1} parent=5 // pred_fallthru
        _
      %p207 = scmp.lt.s32.totalorder %s20, 2
      // Predicated region
      $region21: #{tpu_custom_call.1} parent=5 // pred_check
        %p208 = pneg %p207
      $region22: #{tpu_custom_call.1} parent=5 // pred_check_branch
        %210 = sbr.rel (%p208) target = $region24
      $region23: #{tpu_custom_call.1} parent=5 // pred_region
        // Predicated region
        $region25: #{tpu_custom_call.1} parent=23 // pred_check
          %p211 = pneg %p54
        $region26: #{tpu_custom_call.1} parent=23 // pred_check_branch
          %213 = sbr.rel (%p211) target = $region28
        $region27: #{tpu_custom_call.1} parent=23 // pred_region
          %s214 = sand.u32 %s44, 1
          %s215 = scalar_lea.sflag [#allocation4], %s214
          %s216 = sand.u32 %s44, 1
          %s217 = smul.addr %s216, 8
          %s218 = scalar_lea.vmem [#allocation3], %s217
          %s220 = ssub.s32 128, 128
          %221 = vsyncadd %s215, %s220
          %s222 = sadd.s32 %s28, %s27
          %s223 = smul.addr %s222, 128
          %s224 = scalar_lea.hbm %s0, %s223
          %s226 = sshll.u32 %s218, 4
          %s227 = int_to_ptr.vmem [resolvable:$true] %s226
          %229 = dma.hbm_to_vmem [thread:$0]  %s224, 128, %s227, %s215
        $region28: #{tpu_custom_call.1} parent=23 // pred_fallthru
          _
        // Predicated region
        $region29: #{tpu_custom_call.1} parent=23 // pred_check
          %p230 = pneg %p82
        $region30: #{tpu_custom_call.1} parent=23 // pred_check_branch
          %232 = sbr.rel (%p230) target = $region32
        $region31: #{tpu_custom_call.1} parent=23 // pred_region
          %s233 = sand.u32 %s20, 1
          %s234 = scalar_lea.sflag [#allocation7], %s233
          %s235 = sand.u32 %s72, 1
          %s236 = smul.addr %s235, 8
          %s237 = scalar_lea.vmem [#allocation6], %s236
          %s239 = ssub.s32 128, 128
          %240 = vsyncadd %s234, %s239
          %s241 = sadd.s32 %s28, %s27
          %s242 = smul.addr %s241, 128
          %s243 = scalar_lea.hbm %s1, %s242
          %s245 = sshll.u32 %s237, 4
          %s246 = int_to_ptr.vmem [resolvable:$true] %s245
          %248 = dma.hbm_to_vmem [thread:$0]  %s243, 128, %s246, %s234
        $region32: #{tpu_custom_call.1} parent=23 // pred_fallthru
          _
        // Predicated region
        $region33: #{tpu_custom_call.1} parent=23 // pred_check
          %p249 = pneg %p110
        $region34: #{tpu_custom_call.1} parent=23 // pred_check_branch
          %251 = sbr.rel (%p249) target = $region36
        $region35: #{tpu_custom_call.1} parent=23 // pred_region
          %s252 = sand.u32 %s20, 1
          %s253 = scalar_lea.sflag [#allocation7], %s252
          %s254 = sand.u32 %s100, 1
          %s255 = smul.addr %s254, 8
          %s256 = scalar_lea.vmem [#allocation8], %s255
          %s258 = ssub.s32 128, 128
          %259 = vsyncadd %s253, %s258
          %s260 = sadd.s32 %s28, %s27
          %s261 = smul.addr %s260, 128
          %s262 = scalar_lea.hbm %s2, %s261
          %s264 = sshll.u32 %s256, 4
          %s265 = int_to_ptr.vmem [resolvable:$true] %s264
          %267 = dma.hbm_to_vmem [thread:$0]  %s262, 128, %s265, %s253
        $region36: #{tpu_custom_call.1} parent=23 // pred_fallthru
          _
      $region24: #{tpu_custom_call.1} parent=5 // pred_fallthru
        _
      %p268 = scmp.le.s32.totalorder 1, %s20
      %p269 = scmp.lt.s32.totalorder %s20, 3
      %p270 = pnand %p268, %p269
      %p271 = pneg %p270
      // Predicated region
      $region37: #{tpu_custom_call.1} parent=5 // pred_check
        _
      $region38: #{tpu_custom_call.1} parent=5 // pred_check_branch
        %273 = sbr.rel (%p270) target = $region40
      $region39: #{tpu_custom_call.1} parent=5 // pred_region
        %s274 = ssub.s32 %s20, 1
        %s275 = sand.u32 %s47, 1
        %s276 = scalar_lea.sflag [#allocation4], %s275
        %s277 = sand.u32 %s47, 1
        %s278 = smul.addr %s277, 8
        %s279 = scalar_lea.vmem [#allocation3], %s278
        // Predicated region
        $region41: #{tpu_custom_call.1} parent=39 // pred_check
          %p280 = pneg %p60
        $region42: #{tpu_custom_call.1} parent=39 // pred_check_branch
          %282 = sbr.rel (%p280) target = $region44
        $region43: #{tpu_custom_call.1} parent=39 // pred_region
          %283 = dma.done %s276, 128
        $region44: #{tpu_custom_call.1} parent=39 // pred_fallthru
          _
        %s284 = sand.u32 %s25, 1
        %s285 = scalar_lea.sflag [#allocation7], %s284
        %s286 = sand.u32 %s75, 1
        %s287 = smul.addr %s286, 8
        %s288 = scalar_lea.vmem [#allocation6], %s287
        // Predicated region
        $region45: #{tpu_custom_call.1} parent=39 // pred_check
          %p289 = pneg %p88
        $region46: #{tpu_custom_call.1} parent=39 // pred_check_branch
          %291 = sbr.rel (%p289) target = $region48
        $region47: #{tpu_custom_call.1} parent=39 // pred_region
          %292 = dma.done %s285, 128
        $region48: #{tpu_custom_call.1} parent=39 // pred_fallthru
          _
        %s293 = sand.u32 %s25, 1
        %s294 = scalar_lea.sflag [#allocation7], %s293
        %s295 = sand.u32 %s103, 1
        %s296 = smul.addr %s295, 8
        %s297 = scalar_lea.vmem [#allocation8], %s296
        // Predicated region
        $region49: #{tpu_custom_call.1} parent=39 // pred_check
          %p298 = pneg %p116
        $region50: #{tpu_custom_call.1} parent=39 // pred_check_branch
          %300 = sbr.rel (%p298) target = $region52
        $region51: #{tpu_custom_call.1} parent=39 // pred_region
          %301 = dma.done %s294, 128
        $region52: #{tpu_custom_call.1} parent=39 // pred_fallthru
          _
        %s302 = sand.u32 %s47, 1
        %s303 = scalar_lea.sflag [#allocation4], %s302
        %s304 = sand.u32 %s47, 1
        %s305 = smul.addr %s304, 8
        %s306 = scalar_lea.vmem [#allocation3], %s305
        %p307 = pneg %p60
        %p308 = pneg %p57
        %s309 = sand.u32 %s25, 1
        %s310 = scalar_lea.sflag [#allocation7], %s309
        %s311 = sand.u32 %s75, 1
        %s312 = smul.addr %s311, 8
        %s313 = scalar_lea.vmem [#allocation6], %s312
        %p314 = pneg %p88
        %p315 = pneg %p85
        %s316 = sand.u32 %s25, 1
        %s317 = scalar_lea.sflag [#allocation7], %s316
        %s318 = sand.u32 %s103, 1
        %s319 = smul.addr %s318, 8
        %s320 = scalar_lea.vmem [#allocation8], %s319
        %p321 = pneg %p116
        %p322 = pneg %p113
        %p323 = pneg %p137
        %p324 = pneg %p134
        %p325 = pneg %p158
        %p326 = pneg %p155
        %p327 = pneg %p186
        %p328 = pneg %p183
        %s329 = sand.u32 %s173, 1
        %s330 = scalar_lea.sflag [#allocation5], %s329
        %s331 = sand.u32 %s173, 1
        %s332 = smul.addr %s331, 4
        %s333 = scalar_lea.vmem [#allocation9], %s332
        %v334 = vld [vmem:[%s279] sm:$0xff]
        %335 = vst [vmem:[#allocation2] sm:$0xff] %v334
        %v336 = vld [vmem:[%s288] sm:$0xff]
        %337 = vst [vmem:[#allocation2 + $0x8] sm:$0xff] %v336
        %v338 = vld [vmem:[%s297] sm:$0xff]
        %339 = vst [vmem:[#allocation2 + $0x10] sm:$0xff] %v338
        %v340 = vld [vmem:[%s3] sm:$0xff]
        %v341 = vld [vmem:[%s3 + $0x8] sm:$0xff]
        %v342 = vld [vmem:[%s3 + $0x10] sm:$0xff]
        %v343 = vld [vmem:[#allocation2] sm:$0xff]
        %v344 = vld [vmem:[#allocation2 + $0x8] sm:$0xff]
        %v345 = vld [vmem:[#allocation2 + $0x10] sm:$0xff]
        %vm346 = vcmask 195584
        %v348 = vsel %vm346, %v340, 0
        %v351 = vsel %vm346, %v341, 0
        %v354 = vsel %vm346, %v342, 0
        %356 = vmatprep.subr.mxu0 0.0
        %357 = vmatpush1.msra.mxu0 %v343
        %358 = vmatprep.subr.mxu0 0.0
        %359 = vmatpush1.msra.mxu0 %v344
        %360 = vmatprep.subr.mxu0 0.0
        %361 = vmatpush1.msra.mxu0 %v345
        %362 = vmatprep.subr.mxu0 0.0
        %363 = vmatpush1.msra.mxu0 0.0
        %364 = vmatprep.subr.mxu0 0.0
        %365 = vmatpush1.msra.mxu0 0.0
        %366 = vmatprep.subr.mxu0 0.0
        %367 = vmatpush1.msra.mxu0 0.0
        %368 = vmatprep.subr.mxu0 0.0
        %369 = vmatpush1.msra.mxu0 0.0
        %370 = vmatprep.subr.mxu0 0.0
        %371 = vmatpush1.msra.mxu0 0.0
        %372 = vmatprep.subr.mxu0 0.0
        %373 = vmatpush1.msra.mxu0 0.0
        %374 = vmatprep.subr.mxu0 0.0
        %375 = vmatpush1.msra.mxu0 0.0
        %376 = vmatprep.subr.mxu0 0.0
        %377 = vmatpush1.msra.mxu0 0.0
        %378 = vmatprep.subr.mxu0 0.0
        %379 = vmatpush1.msra.mxu0 0.0
        %380 = vmatprep.subr.mxu0 0.0
        %381 = vmatpush1.msra.mxu0 0.0
        %382 = vmatprep.subr.mxu0 0.0
        %383 = vmatpush1.msra.mxu0 0.0
        %384 = vmatprep.subr.mxu0 0.0
        %385 = vmatpush1.msra.mxu0 0.0
        %386 = vmatprep.subr.mxu0 0.0
        %387 = vmatpush1.msra.mxu0 0.0
        %388 = vmatprep.subr.mxu0 0.0
        %389 = vmatpush1.msra.mxu0 0.0
        %390 = vmatprep.subr.mxu0 0.0
        %391 = vmatpush1.msra.mxu0 0.0
        %392 = vmatprep.subr.mxu0 0.0
        %393 = vmatpush1.msra.mxu0 0.0
        %394 = vmatprep.subr.mxu0 0.0
        %395 = vmatpush1.msra.mxu0 0.0
        %396 = vmatprep.subr.mxu0 0.0
        %397 = vmatpush1.msra.mxu0 0.0
        %398 = vmatprep.subr.mxu0 0.0
        %399 = vmatpush1.msra.mxu0 0.0
        %400 = vmatprep.subr.mxu0 0.0
        %401 = vmatpush1.msra.mxu0 0.0
        %402 = vmatprep.subr.mxu0 0.0
        %403 = vmatpush1.msra.mxu0 0.0
        %404 = vmatprep.subr.mxu0 0.0
        %405 = vmatpush1.msra.mxu0 0.0
        %406 = vmatprep.subr.mxu0 0.0
        %407 = vmatpush1.msra.mxu0 0.0
        %408 = vmatprep.subr.mxu0 0.0
        %409 = vmatpush1.msra.mxu0 0.0
        %410 = vmatprep.subr.mxu0 0.0
        %411 = vmatpush1.msra.mxu0 0.0
        %412 = vmatprep.subr.mxu0 0.0
        %413 = vmatpush1.msra.mxu0 0.0
        %414 = vmatprep.subr.mxu0 0.0
        %415 = vmatpush1.msra.mxu0 0.0
        %416 = vmatprep.subr.mxu0 0.0
        %417 = vmatpush1.msra.mxu0 0.0
        %418 = vmatprep.subr.mxu0 0.0
        %419 = vmatpush1.msra.mxu0 0.0
        %420 = vmatprep.mubr.f32.mxu0 0.0
        %421 = vmatmul.mubr.f32.gmra.mrb[0].mxu0 %v348
        %v422 = vpop.f32.mrb[0].mxu0
        %v423 = vadd.f32 0.0, %v422
        %v424 = vpop.f32.mrb[0].mxu0
        %425 = vmatprep.mubr.f32.mxu0 0.0
        %426 = vmatmul.mubr.f32.gmra.mrb[0].mxu0 %v351
        %v427 = vpop.f32.mrb[0].mxu0
        %v428 = vadd.f32 0.0, %v427
        %v429 = vpop.f32.mrb[0].mxu0
        %430 = vmatprep.mubr.f32.mxu0 0.0
        %431 = vmatmul.mubr.f32.gmra.mrb[0].mxu0 %v354
        %v432 = vpop.f32.mrb[0].mxu0
        %v433 = vadd.f32 0.0, %v432
        %v434 = vpop.f32.mrb[0].mxu0
        %435 = vdwg.mxu0
        %v436 = vld [vmem:[%s4] sm:$0xff]
        %v437 = vld [vmem:[%s4 + $0x8] sm:$0xff]
        %439 = vset.pattern.permute.xlu0 0
        %440 = vperm.xlu0 %439, %v436
        %v441 = vpop.permute.xlu0 %440
        %444 = vset.pattern.permute.xlu0 0
        %445 = vperm.xlu0 %444, %v437
        %v446 = vpop.permute.xlu0 %445
        %v448 = vadd.f32 %v423, %v441
        %v449 = vadd.f32 %v428, %v446
        %v450 = vtanh.pop %v448
        %v451 = vxor.u32 %v449, 2147483648
        %v452 = vmul.f32 %v451, 1.442695
        %v453 = vpow.pop %v452
        %v454 = vadd.f32 %v453, 1.0
        %v455 = vrcp.pop %v454
        %v456 = vmul.f32 1.0, %v455
        %v457 = vmul.f32 %v450, %v456
        %v458 = vadd.f32 %v457, %v433
        %459 = vst [vmem:[%s333] sm:$0xf] %v458
        %s460 = sand.u32 %s173, 1
        %s461 = scalar_lea.sflag [#allocation5], %s460
        %s462 = sand.u32 %s173, 1
        %s463 = smul.addr %s462, 4
        %s464 = scalar_lea.vmem [#allocation9], %s463
        // Predicated region
        $region53: #{tpu_custom_call.1} parent=39 // pred_check
          %p465 = pneg %p183
        $region54: #{tpu_custom_call.1} parent=39 // pred_check_branch
          %467 = sbr.rel (%p465) target = $region56
        $region55: #{tpu_custom_call.1} parent=39 // pred_region
          %s469 = ssub.s32 64, 64
          %470 = vsyncadd %s461, %s469
          %s471 = sadd.s32 %s30, %s29
          %s472 = smul.addr %s471, 64
          %s473 = scalar_lea.hbm %s5, %s472
          %s475 = sshll.u32 %s464, 4
          %s476 = int_to_ptr.vmem [resolvable:$true] %s475
          %478 = dma.vmem_to_hbm [thread:$0]  %s476, 64, %s473, %s461
        $region56: #{tpu_custom_call.1} parent=39 // pred_fallthru
          _
      $region40: #{tpu_custom_call.1} parent=5 // pred_fallthru
        _
      %p479 = scmp.le.s32.totalorder 2, %s20
      // Predicated region
      $region57: #{tpu_custom_call.1} parent=5 // pred_check
        %p480 = pneg %p479
      $region58: #{tpu_custom_call.1} parent=5 // pred_check_branch
        %482 = sbr.rel (%p480) target = $region60
      $region59: #{tpu_custom_call.1} parent=5 // pred_region
        %s483 = ssub.s32 %s20, 2
        // Predicated region
        $region61: #{tpu_custom_call.1} parent=59 // pred_check
          %p484 = pneg %p189
        $region62: #{tpu_custom_call.1} parent=59 // pred_check_branch
          %486 = sbr.rel (%p484) target = $region64
        $region63: #{tpu_custom_call.1} parent=59 // pred_region
          %s487 = sand.u32 %s174, 1
          %s488 = scalar_lea.sflag [#allocation5], %s487
          %s489 = sand.u32 %s174, 1
          %s490 = smul.addr %s489, 4
          %s491 = scalar_lea.vmem [#allocation9], %s490
          %492 = dma.done %s488, 64
        $region64: #{tpu_custom_call.1} parent=59 // pred_fallthru
          _
      $region60: #{tpu_custom_call.1} parent=5 // pred_fallthru
        _
    $region6: #{tpu_custom_call.1} parent=1 // loop_footer
      %s24 = sadd.s32 1, %s20
    $region7: #{tpu_custom_call.1} parent=1 // loop_footer_branch
      %19 = sbr.rel target = $region3
    $region8: #{tpu_custom_call.1} parent=1 // loop_exit
      _
    %493 = vsyncpa [#allocation4], 1
    %s494 = scalar_lea.sflag [#allocation4], 1
    %495 = vsyncpa %s494, 1
    %496 = vsyncpa [#allocation7], 1
    %s497 = scalar_lea.sflag [#allocation7], 1
    %498 = vsyncpa %s497, 1
    %499 = vsyncpa [#allocation5], 1
    %s500 = scalar_lea.sflag [#allocation5], 1
    %501 = vsyncpa %s500, 1

</llo_original>
